<compile_context>
chip_gen: v6e
topology: v6e:2x2x1
jax: 0.10.0
libtpu: 0.0.40
codegen_flags: <defaults>
</compile_context>

<pallas_src>
import functools
import math

import jax
import jax.numpy as jnp
from jax import lax
from jax.experimental import pallas as pl
from jax.experimental.pallas import tpu as pltpu

IGNORE = -100000.0  # matches the module's registered buffer


def _attention_kernel(x_ref, wqkv_ref, bqkv_ref, wo_ref, bo_ref, out_ref,
                      *, n_heads, d_head):
    """One grid step = one batch element; all heads fused into the matmuls."""
    x = x_ref[0]                              # (S, d_model) bf16
    S = x.shape[0]
    Hd = n_heads * d_head

    # Fused QKV projection: one lane-dense MXU matmul (S, d_model) @ (d_model, 3*Hd).
    qkv = jnp.dot(x, wqkv_ref[...], preferred_element_type=jnp.float32)
    qkv = qkv + bqkv_ref[...]                 # (S, 3*Hd) f32; bias broadcasts over S

    # 1/sqrt(d_head) was folded into W_Q / b_Q in the wrapper, so q is pre-scaled.
    q = qkv[:, 0:Hd].astype(jnp.bfloat16)
    k = qkv[:, Hd:2 * Hd].astype(jnp.bfloat16)
    v = qkv[:, 2 * Hd:3 * Hd].astype(jnp.bfloat16)

    # Causal mask built once per grid step (not once per head).
    row = lax.broadcasted_iota(jnp.int32, (S, S), 0)   # query position
    col = lax.broadcasted_iota(jnp.int32, (S, S), 1)   # key position
    causal = col > row

    # Per-head attention (heads are independent); static unroll, no grid axis.
    # TODO(synk): for realistic n_ctx (1024) add a query-tile grid axis + online
    # (flash-style) softmax over KV tiles so the (S,S) scores never materialize
    # in full, and re-derive per-generation VMEM tile sizes (smaller on v7x).
    z_heads = []
    for h in range(n_heads):
        sl = slice(h * d_head, (h + 1) * d_head)
        qh, kh, vh = q[:, sl], k[:, sl], v[:, sl]
        # Contract the d_head axes directly -- no explicit k.T / XLU transpose.
        s = lax.dot_general(qh, kh, (((1,), (1,)), ((), ())),
                            preferred_element_type=jnp.float32)       # (S, S) f32
        s = jnp.where(causal, IGNORE, s)
        # Numerically stable softmax in f32; divide replaced by EUP reciprocal.
        m = jnp.max(s, axis=-1, keepdims=True)
        e = jnp.exp(s - m)
        denom = jnp.sum(e, axis=-1, keepdims=True)
        p = (e * pl.reciprocal(denom, approx=True)).astype(jnp.bfloat16)
        z_heads.append(jnp.dot(p, vh, preferred_element_type=jnp.float32))

    # Single fused output projection (S, Hd) @ (Hd, d_model); write output once.
    z = jnp.concatenate(z_heads, axis=-1).astype(jnp.bfloat16)
    out = jnp.dot(z, wo_ref[...], preferred_element_type=jnp.float32) + bo_ref[...]
    out_ref[0] = out


def attention_forward(x, W_Q, W_K, W_V, W_O, b_Q, b_K, b_V, b_O):
    """x: (B, S, d_model) float32. Returns (B, S, d_model) float32."""
    B, S, d_model = x.shape
    n_heads, _, d_head = W_Q.shape
    Hd = n_heads * d_head
    scale = 1.0 / math.sqrt(d_head)

    def fold(w):   # (n_heads, d_model, d_head) -> (d_model, n_heads*d_head)
        return jnp.transpose(w, (1, 0, 2)).reshape(d_model, Hd)

    # Fold heads into the weight matrices (lane-dense matmuls) and fold the
    # 1/sqrt(d_head) scale into the Q weights/bias -- all free at trace time.
    w_qkv = jnp.concatenate([fold(W_Q) * scale, fold(W_K), fold(W_V)],
                            axis=1).astype(jnp.bfloat16)              # (d_model, 3*Hd)
    b_qkv = jnp.concatenate(
        [b_Q.reshape(Hd) * scale, b_K.reshape(Hd), b_V.reshape(Hd)]
    ).reshape(1, 3 * Hd).astype(jnp.float32)
    w_o = W_O.reshape(Hd, d_model).astype(jnp.bfloat16)                # (Hd, d_model)
    b_o = b_O.reshape(1, d_model).astype(jnp.float32)
    x_bf16 = x.astype(jnp.bfloat16)

    kernel = functools.partial(_attention_kernel, n_heads=n_heads, d_head=d_head)

    return pl.pallas_call(
        kernel,
        out_shape=jax.ShapeDtypeStruct((B, S, d_model), jnp.float32),
        grid_spec=pltpu.PrefetchScalarGridSpec(
            num_scalar_prefetch=0,
            grid=(B,),   # batch-parallel; weights stay resident across steps
            in_specs=[
                pl.BlockSpec((1, S, d_model), lambda b: (b, 0, 0)),     # x
                pl.BlockSpec((d_model, 3 * Hd), lambda b: (0, 0)),      # fused W_QKV
                pl.BlockSpec((1, 3 * Hd), lambda b: (0, 0)),            # fused b_QKV
                pl.BlockSpec((Hd, d_model), lambda b: (0, 0)),          # W_O
                pl.BlockSpec((1, d_model), lambda b: (0, 0)),           # b_O
            ],
            out_specs=pl.BlockSpec((1, S, d_model), lambda b: (b, 0, 0)),
        ),
        compiler_params=pltpu.CompilerParams(
            dimension_semantics=("parallel",)),
    )(x_bf16, w_qkv, b_qkv, w_o, b_o)


def attention_reference(x, W_Q, W_K, W_V, W_O, b_Q, b_K, b_V, b_O):
    """Plain-JAX f32 reference mirroring the PyTorch forward exactly."""
    d_head = W_Q.shape[-1]
    q = jnp.einsum("bpd,ndh->bpnh", x, W_Q) + b_Q
    k = jnp.einsum("bpd,ndh->bpnh", x, W_K) + b_K
    v = jnp.einsum("bpd,ndh->bpnh", x, W_V) + b_V
    scores = jnp.einsum("bqnh,bknh->bnqk", q, k) / math.sqrt(d_head)
    S = x.shape[1]
    mask = jnp.triu(jnp.ones((S, S), dtype=bool), k=1)
    scores = jnp.where(mask, IGNORE, scores)
    pattern = jax.nn.softmax(scores, axis=-1)
    z = jnp.einsum("bknh,bnqk->bqnh", v, pattern)
    out = jnp.einsum("bqnh,nhd->bqd", z, W_O) + b_O
    return out


if __name__ == "__main__":
    # small config consistent with the module's shape conventions
    batch, seq = 2, 8
    d_model, n_heads, d_head = 32, 4, 8
    init_range = 0.02

    key = jax.random.PRNGKey(0)
    kx, kq, kk, kv, ko, kbq, kbk, kbv, kbo = jax.random.split(key, 9)

    x = jax.random.normal(kx, (batch, seq, d_model), dtype=jnp.float32)
    W_Q = init_range * jax.random.normal(kq, (n_heads, d_model, d_head), dtype=jnp.float32)
    W_K = init_range * jax.random.normal(kk, (n_heads, d_model, d_head), dtype=jnp.float32)
    W_V = init_range * jax.random.normal(kv, (n_heads, d_model, d_head), dtype=jnp.float32)
    W_O = init_range * jax.random.normal(ko, (n_heads, d_head, d_model), dtype=jnp.float32)
    # non-zero biases to exercise the bias paths (module inits them to zero)
    b_Q = init_range * jax.random.normal(kbq, (n_heads, d_head), dtype=jnp.float32)
    b_K = init_range * jax.random.normal(kbk, (n_heads, d_head), dtype=jnp.float32)
    b_V = init_range * jax.random.normal(kbv, (n_heads, d_head), dtype=jnp.float32)
    b_O = init_range * jax.random.normal(kbo, (d_model,), dtype=jnp.float32)

    out = attention_forward(x, W_Q, W_K, W_V, W_O, b_Q, b_K, b_V, b_O)
    out = jax.block_until_ready(out)

    ref = attention_reference(x, W_Q, W_K, W_V, W_O, b_Q, b_K, b_V, b_O)
    assert out.shape == (batch, seq, d_model)
    # bf16 MXU operands + approx reciprocal => bf16-level tolerance vs f32 reference
    assert jnp.allclose(out, ref, atol=2e-3, rtol=2e-2), "mismatch vs reference"

    print("KERNEL_OK")
</pallas_src>

<mosaic_0001>
module attributes {stable_mosaic.version = 11 : i64} {
  func.func @_attention_kernel(%arg0: i32, %arg1: memref<1x8x32xbf16, #tpu.memory_space<vmem>>, %arg2: memref<32x96xbf16, #tpu.memory_space<vmem>>, %arg3: memref<1x96xf32, #tpu.memory_space<vmem>>, %arg4: memref<32x32xbf16, #tpu.memory_space<vmem>>, %arg5: memref<1x32xf32, #tpu.memory_space<vmem>>, %arg6: memref<1x8x32xf32, #tpu.memory_space<vmem>>) attributes {dimension_semantics = [#tpu.dimension_semantics<parallel>], iteration_bounds = array<i64: 2>, scalar_prefetch = 0 : i64, scratch_operands = 0 : i64, tpu.core_type = #tpu.core_type<tc>, window_params = [{transform_indices = @transform_0, window_bounds = array<i64: 1, 8, 32>}, {pipeline_mode = #tpu.pipeline_mode<synchronous>, transform_indices = @transform_1, window_bounds = array<i64: 32, 96>}, {pipeline_mode = #tpu.pipeline_mode<synchronous>, transform_indices = @transform_2, window_bounds = array<i64: 1, 96>}, {pipeline_mode = #tpu.pipeline_mode<synchronous>, transform_indices = @transform_3, window_bounds = array<i64: 32, 32>}, {pipeline_mode = #tpu.pipeline_mode<synchronous>, transform_indices = @transform_4, window_bounds = array<i64: 1, 32>}, {transform_indices = @transform_5, window_bounds = array<i64: 1, 8, 32>}]} {
    %c0 = arith.constant 0 : index
    %c0_0 = arith.constant 0 : index
    %c0_1 = arith.constant 0 : index
    %0 = vector.load %arg1[%c0, %c0_0, %c0_1] : memref<1x8x32xbf16, #tpu.memory_space<vmem>>, vector<1x8x32xbf16>
    %1 = vector.shape_cast %0 : vector<1x8x32xbf16> to vector<8x32xbf16>
    %c0_2 = arith.constant 0 : index
    %c0_3 = arith.constant 0 : index
    %2 = vector.load %arg2[%c0_2, %c0_3] : memref<32x96xbf16, #tpu.memory_space<vmem>>, vector<32x96xbf16>
    %cst = arith.constant dense<0.000000e+00> : vector<8x96xf32>
    %3 = tpu.matmul %1, %2, %cst {dimension_numbers = #tpu.dot_dimension_numbers<[1], [0], [0], [1], [0, 0, 1, 1], [], []>} : vector<8x32xbf16>, vector<32x96xbf16>, vector<8x96xf32> -> vector<8x96xf32>
    %c0_4 = arith.constant 0 : index
    %c0_5 = arith.constant 0 : index
    %4 = vector.load %arg3[%c0_4, %c0_5] : memref<1x96xf32, #tpu.memory_space<vmem>>, vector<1x96xf32>
    %5 = vector.broadcast %4 : vector<1x96xf32> to vector<8x96xf32>
    %6 = arith.addf %3, %5 : vector<8x96xf32>
    %7 = vector.extract_strided_slice %6 {offsets = [0, 0], sizes = [8, 32], strides = [1, 1]} : vector<8x96xf32> to vector<8x32xf32>
    %8 = arith.truncf %7 : vector<8x32xf32> to vector<8x32xbf16>
    %9 = vector.extract_strided_slice %6 {offsets = [0, 32], sizes = [8, 32], strides = [1, 1]} : vector<8x96xf32> to vector<8x32xf32>
    %10 = arith.truncf %9 : vector<8x32xf32> to vector<8x32xbf16>
    %11 = vector.extract_strided_slice %6 {offsets = [0, 64], sizes = [8, 32], strides = [1, 1]} : vector<8x96xf32> to vector<8x32xf32>
    %12 = arith.truncf %11 : vector<8x32xf32> to vector<8x32xbf16>
    %13 = tpu.iota {dimensions = array<i32: 0>} : vector<8x8xi32>
    %14 = tpu.iota {dimensions = array<i32: 1>} : vector<8x8xi32>
    %15 = arith.cmpi sgt, %14, %13 : vector<8x8xi32>
    %16 = vector.extract_strided_slice %8 {offsets = [0, 0], sizes = [8, 8], strides = [1, 1]} : vector<8x32xbf16> to vector<8x8xbf16>
    %17 = vector.extract_strided_slice %10 {offsets = [0, 0], sizes = [8, 8], strides = [1, 1]} : vector<8x32xbf16> to vector<8x8xbf16>
    %18 = vector.extract_strided_slice %12 {offsets = [0, 0], sizes = [8, 8], strides = [1, 1]} : vector<8x32xbf16> to vector<8x8xbf16>
    %cst_6 = arith.constant dense<0.000000e+00> : vector<8x8xf32>
    %19 = tpu.matmul %16, %17, %cst_6 {dimension_numbers = #tpu.dot_dimension_numbers<[1], [1], [0], [0], [0, 0, 1, 0], [], []>} : vector<8x8xbf16>, vector<8x8xbf16>, vector<8x8xf32> -> vector<8x8xf32>
    %cst_7 = arith.constant -1.000000e+05 : f32
    %20 = vector.broadcast %cst_7 : f32 to vector<8x8xf32>
    %21 = arith.select %15, %20, %19 : vector<8x8xi1>, vector<8x8xf32>
    %cst_8 = arith.constant dense<0xFF800000> : vector<8xf32>
    %22 = vector.multi_reduction <maximumf>, %21, %cst_8 [1] : vector<8x8xf32> to vector<8xf32>
    %23 = vector.shape_cast %22 : vector<8xf32> to vector<8x1xf32>
    %24 = vector.broadcast %23 : vector<8x1xf32> to vector<8x8xf32>
    %25 = arith.subf %21, %24 : vector<8x8xf32>
    %26 = math.exp %25 : vector<8x8xf32>
    %cst_9 = arith.constant dense<0.000000e+00> : vector<8xf32>
    %27 = vector.multi_reduction <add>, %26, %cst_9 [1] : vector<8x8xf32> to vector<8xf32>
    %28 = vector.shape_cast %27 : vector<8xf32> to vector<8x1xf32>
    %29 = tpu.reciprocal %28 {approx = true} : vector<8x1xf32> -> vector<8x1xf32>
    %30 = vector.broadcast %29 : vector<8x1xf32> to vector<8x8xf32>
    %31 = arith.mulf %26, %30 : vector<8x8xf32>
    %32 = arith.truncf %31 : vector<8x8xf32> to vector<8x8xbf16>
    %cst_10 = arith.constant dense<0.000000e+00> : vector<8x8xf32>
    %33 = tpu.matmul %32, %18, %cst_10 {dimension_numbers = #tpu.dot_dimension_numbers<[1], [0], [0], [1], [0, 0, 1, 1], [], []>} : vector<8x8xbf16>, vector<8x8xbf16>, vector<8x8xf32> -> vector<8x8xf32>
    %34 = vector.extract_strided_slice %8 {offsets = [0, 8], sizes = [8, 8], strides = [1, 1]} : vector<8x32xbf16> to vector<8x8xbf16>
    %35 = vector.extract_strided_slice %10 {offsets = [0, 8], sizes = [8, 8], strides = [1, 1]} : vector<8x32xbf16> to vector<8x8xbf16>
    %36 = vector.extract_strided_slice %12 {offsets = [0, 8], sizes = [8, 8], strides = [1, 1]} : vector<8x32xbf16> to vector<8x8xbf16>
    %cst_11 = arith.constant dense<0.000000e+00> : vector<8x8xf32>
    %37 = tpu.matmul %34, %35, %cst_11 {dimension_numbers = #tpu.dot_dimension_numbers<[1], [1], [0], [0], [0, 0, 1, 0], [], []>} : vector<8x8xbf16>, vector<8x8xbf16>, vector<8x8xf32> -> vector<8x8xf32>
    %cst_12 = arith.constant -1.000000e+05 : f32
    %38 = vector.broadcast %cst_12 : f32 to vector<8x8xf32>
    %39 = arith.select %15, %38, %37 : vector<8x8xi1>, vector<8x8xf32>
    %cst_13 = arith.constant dense<0xFF800000> : vector<8xf32>
    %40 = vector.multi_reduction <maximumf>, %39, %cst_13 [1] : vector<8x8xf32> to vector<8xf32>
    %41 = vector.shape_cast %40 : vector<8xf32> to vector<8x1xf32>
    %42 = vector.broadcast %41 : vector<8x1xf32> to vector<8x8xf32>
    %43 = arith.subf %39, %42 : vector<8x8xf32>
    %44 = math.exp %43 : vector<8x8xf32>
    %cst_14 = arith.constant dense<0.000000e+00> : vector<8xf32>
    %45 = vector.multi_reduction <add>, %44, %cst_14 [1] : vector<8x8xf32> to vector<8xf32>
    %46 = vector.shape_cast %45 : vector<8xf32> to vector<8x1xf32>
    %47 = tpu.reciprocal %46 {approx = true} : vector<8x1xf32> -> vector<8x1xf32>
    %48 = vector.broadcast %47 : vector<8x1xf32> to vector<8x8xf32>
    %49 = arith.mulf %44, %48 : vector<8x8xf32>
    %50 = arith.truncf %49 : vector<8x8xf32> to vector<8x8xbf16>
    %cst_15 = arith.constant dense<0.000000e+00> : vector<8x8xf32>
    %51 = tpu.matmul %50, %36, %cst_15 {dimension_numbers = #tpu.dot_dimension_numbers<[1], [0], [0], [1], [0, 0, 1, 1], [], []>} : vector<8x8xbf16>, vector<8x8xbf16>, vector<8x8xf32> -> vector<8x8xf32>
    %52 = vector.extract_strided_slice %8 {offsets = [0, 16], sizes = [8, 8], strides = [1, 1]} : vector<8x32xbf16> to vector<8x8xbf16>
    %53 = vector.extract_strided_slice %10 {offsets = [0, 16], sizes = [8, 8], strides = [1, 1]} : vector<8x32xbf16> to vector<8x8xbf16>
    %54 = vector.extract_strided_slice %12 {offsets = [0, 16], sizes = [8, 8], strides = [1, 1]} : vector<8x32xbf16> to vector<8x8xbf16>
    %cst_16 = arith.constant dense<0.000000e+00> : vector<8x8xf32>
    %55 = tpu.matmul %52, %53, %cst_16 {dimension_numbers = #tpu.dot_dimension_numbers<[1], [1], [0], [0], [0, 0, 1, 0], [], []>} : vector<8x8xbf16>, vector<8x8xbf16>, vector<8x8xf32> -> vector<8x8xf32>
    %cst_17 = arith.constant -1.000000e+05 : f32
    %56 = vector.broadcast %cst_17 : f32 to vector<8x8xf32>
    %57 = arith.select %15, %56, %55 : vector<8x8xi1>, vector<8x8xf32>
    %cst_18 = arith.constant dense<0xFF800000> : vector<8xf32>
    %58 = vector.multi_reduction <maximumf>, %57, %cst_18 [1] : vector<8x8xf32> to vector<8xf32>
    %59 = vector.shape_cast %58 : vector<8xf32> to vector<8x1xf32>
    %60 = vector.broadcast %59 : vector<8x1xf32> to vector<8x8xf32>
    %61 = arith.subf %57, %60 : vector<8x8xf32>
    %62 = math.exp %61 : vector<8x8xf32>
    %cst_19 = arith.constant dense<0.000000e+00> : vector<8xf32>
    %63 = vector.multi_reduction <add>, %62, %cst_19 [1] : vector<8x8xf32> to vector<8xf32>
    %64 = vector.shape_cast %63 : vector<8xf32> to vector<8x1xf32>
    %65 = tpu.reciprocal %64 {approx = true} : vector<8x1xf32> -> vector<8x1xf32>
    %66 = vector.broadcast %65 : vector<8x1xf32> to vector<8x8xf32>
    %67 = arith.mulf %62, %66 : vector<8x8xf32>
    %68 = arith.truncf %67 : vector<8x8xf32> to vector<8x8xbf16>
    %cst_20 = arith.constant dense<0.000000e+00> : vector<8x8xf32>
    %69 = tpu.matmul %68, %54, %cst_20 {dimension_numbers = #tpu.dot_dimension_numbers<[1], [0], [0], [1], [0, 0, 1, 1], [], []>} : vector<8x8xbf16>, vector<8x8xbf16>, vector<8x8xf32> -> vector<8x8xf32>
    %70 = vector.extract_strided_slice %8 {offsets = [0, 24], sizes = [8, 8], strides = [1, 1]} : vector<8x32xbf16> to vector<8x8xbf16>
    %71 = vector.extract_strided_slice %10 {offsets = [0, 24], sizes = [8, 8], strides = [1, 1]} : vector<8x32xbf16> to vector<8x8xbf16>
    %72 = vector.extract_strided_slice %12 {offsets = [0, 24], sizes = [8, 8], strides = [1, 1]} : vector<8x32xbf16> to vector<8x8xbf16>
    %cst_21 = arith.constant dense<0.000000e+00> : vector<8x8xf32>
    %73 = tpu.matmul %70, %71, %cst_21 {dimension_numbers = #tpu.dot_dimension_numbers<[1], [1], [0], [0], [0, 0, 1, 0], [], []>} : vector<8x8xbf16>, vector<8x8xbf16>, vector<8x8xf32> -> vector<8x8xf32>
    %cst_22 = arith.constant -1.000000e+05 : f32
    %74 = vector.broadcast %cst_22 : f32 to vector<8x8xf32>
    %75 = arith.select %15, %74, %73 : vector<8x8xi1>, vector<8x8xf32>
    %cst_23 = arith.constant dense<0xFF800000> : vector<8xf32>
    %76 = vector.multi_reduction <maximumf>, %75, %cst_23 [1] : vector<8x8xf32> to vector<8xf32>
    %77 = vector.shape_cast %76 : vector<8xf32> to vector<8x1xf32>
    %78 = vector.broadcast %77 : vector<8x1xf32> to vector<8x8xf32>
    %79 = arith.subf %75, %78 : vector<8x8xf32>
    %80 = math.exp %79 : vector<8x8xf32>
    %cst_24 = arith.constant dense<0.000000e+00> : vector<8xf32>
    %81 = vector.multi_reduction <add>, %80, %cst_24 [1] : vector<8x8xf32> to vector<8xf32>
    %82 = vector.shape_cast %81 : vector<8xf32> to vector<8x1xf32>
    %83 = tpu.reciprocal %82 {approx = true} : vector<8x1xf32> -> vector<8x1xf32>
    %84 = vector.broadcast %83 : vector<8x1xf32> to vector<8x8xf32>
    %85 = arith.mulf %80, %84 : vector<8x8xf32>
    %86 = arith.truncf %85 : vector<8x8xf32> to vector<8x8xbf16>
    %cst_25 = arith.constant dense<0.000000e+00> : vector<8x8xf32>
    %87 = tpu.matmul %86, %72, %cst_25 {dimension_numbers = #tpu.dot_dimension_numbers<[1], [0], [0], [1], [0, 0, 1, 1], [], []>} : vector<8x8xbf16>, vector<8x8xbf16>, vector<8x8xf32> -> vector<8x8xf32>
    %88 = tpu.concatenate %33, %51, %69, %87 in 1 : vector<8x8xf32>, vector<8x8xf32>, vector<8x8xf32>, vector<8x8xf32> -> vector<8x32xf32>
    %89 = arith.truncf %88 : vector<8x32xf32> to vector<8x32xbf16>
    %c0_26 = arith.constant 0 : index
    %c0_27 = arith.constant 0 : index
    %90 = vector.load %arg4[%c0_26, %c0_27] : memref<32x32xbf16, #tpu.memory_space<vmem>>, vector<32x32xbf16>
    %cst_28 = arith.constant dense<0.000000e+00> : vector<8x32xf32>
    %91 = tpu.matmul %89, %90, %cst_28 {dimension_numbers = #tpu.dot_dimension_numbers<[1], [0], [0], [1], [0, 0, 1, 1], [], []>} : vector<8x32xbf16>, vector<32x32xbf16>, vector<8x32xf32> -> vector<8x32xf32>
    %c0_29 = arith.constant 0 : index
    %c0_30 = arith.constant 0 : index
    %92 = vector.load %arg5[%c0_29, %c0_30] : memref<1x32xf32, #tpu.memory_space<vmem>>, vector<1x32xf32>
    %93 = vector.broadcast %92 : vector<1x32xf32> to vector<8x32xf32>
    %94 = arith.addf %91, %93 : vector<8x32xf32>
    %c0_31 = arith.constant 0 : index
    %c0_32 = arith.constant 0 : index
    %c0_33 = arith.constant 0 : index
    %95 = vector.load %arg6[%c0_31, %c0_32, %c0_33] : memref<1x8x32xf32, #tpu.memory_space<vmem>>, vector<1x8x32xf32>
    %96 = vector.shape_cast %95 : vector<1x8x32xf32> to vector<8x32xf32>
    %97 = vector.shape_cast %94 : vector<8x32xf32> to vector<1x8x32xf32>
    tpu.vector_store %arg6[%c0_31, %c0_32, %c0_33], %97 {strides = array<i32>} : memref<1x8x32xf32, #tpu.memory_space<vmem>>, vector<1x8x32xf32>,
    return
  }
  func.func @transform_0(%arg0: i32) -> (i32, i32, i32) {
    %c0_i32 = arith.constant 0 : i32
    %c0_i32_0 = arith.constant 0 : i32
    %c0_i32_1 = arith.constant 0 : i32
    return %arg0, %c0_i32, %c0_i32_0 : i32, i32, i32
  }
  func.func @transform_1(%arg0: i32) -> (i32, i32) {
    %c0_i32 = arith.constant 0 : i32
    %c0_i32_0 = arith.constant 0 : i32
    %c0_i32_1 = arith.constant 0 : i32
    return %c0_i32, %c0_i32_0 : i32, i32
  }
  func.func @transform_2(%arg0: i32) -> (i32, i32) {
    %c0_i32 = arith.constant 0 : i32
    %c0_i32_0 = arith.constant 0 : i32
    %c0_i32_1 = arith.constant 0 : i32
    return %c0_i32, %c0_i32_0 : i32, i32
  }
  func.func @transform_3(%arg0: i32) -> (i32, i32) {
    %c0_i32 = arith.constant 0 : i32
    %c0_i32_0 = arith.constant 0 : i32
    %c0_i32_1 = arith.constant 0 : i32
    return %c0_i32, %c0_i32_0 : i32, i32
  }
  func.func @transform_4(%arg0: i32) -> (i32, i32) {
    %c0_i32 = arith.constant 0 : i32
    %c0_i32_0 = arith.constant 0 : i32
    %c0_i32_1 = arith.constant 0 : i32
    return %c0_i32, %c0_i32_0 : i32, i32
  }
  func.func @transform_5(%arg0: i32) -> (i32, i32, i32) {
    %c0_i32 = arith.constant 0 : i32
    %c0_i32_0 = arith.constant 0 : i32
    %c0_i32_1 = arith.constant 0 : i32
    return %arg0, %c0_i32, %c0_i32_0 : i32, i32, i32
  }
}

</mosaic_0001>

<llo_original>
// kernel: tpu_custom_call.1
$region0: #{tpu_custom_call.1}
  #allocation0 [shape = 'u32[]', space=smem, size = 0x4, offset = 0x4, fixed_abs, tag = 'smem constant byte address 0x4 - core index']
  #allocation1 [shape = 'u32[144,128]{1,0:T(1,128)}', space=vmem, size = 0x12000, scoped, tag = 'internal scratch']
  %s0 = inlined_call_operand.hbm [shape: bf16[2,8,32], index: 0, kind: input, shape index: {}]
  %s1 = inlined_call_operand.hbm [shape: bf16[32,96], index: 1, kind: input, shape index: {}]
  %s2 = inlined_call_operand.vmem [shape: f32[1,96], index: 2, kind: input, shape index: {}]
  %s3 = inlined_call_operand.hbm [shape: bf16[32,32], index: 3, kind: input, shape index: {}]
  %s4 = inlined_call_operand.vmem [shape: f32[1,32], index: 4, kind: input, shape index: {}]
  %s5 = inlined_call_operand.hbm [shape: f32[2,8,32], index: 5, kind: output, shape index: {}]
  %s6 = sld [smem:[#allocation0]]
  $region65: #{tpu_custom_call.1} parent=0
    _
  %s8 = ssub.s32 1, %s6
  %s9 = scalar_select 0, %s8, %s6
  $region1: #{tpu_custom_call.1} parent=0
    #allocation2 [shape = 'u8[4096]{0}', space=vmem, size = 0x1000, scoped, tag = 'input window, operand 0']
    #allocation3 [shape = 's32[2]{0}', space=sflag, size = 0x8, scoped, tag = 'scoped memory for tpu_custom_call.1']
    #allocation4 [shape = 's32[2]{0}', space=sflag, size = 0x8, scoped, tag = 'scoped memory for tpu_custom_call.1']
    #allocation5 [shape = 'u8[8192]{0}', space=vmem, size = 0x2000, scoped, tag = 'input window, operand 1, single buffered']
    #allocation6 [shape = 's32[1]{0}', space=sflag, size = 0x4, scoped, tag = 'scoped memory for tpu_custom_call.1']
    #allocation7 [shape = 'u8[8192]{0}', space=vmem, size = 0x2000, scoped, tag = 'input window, operand 3, single buffered']
    #allocation8 [shape = 'u8[8192]{0}', space=vmem, size = 0x2000, scoped, tag = 'output window, operand 0']
    %10 = vsyncpa [#allocation3], 0
    %s11 = scalar_lea.sflag [#allocation3], 1
    %12 = vsyncpa %s11, 0
    %13 = vsyncpa [#allocation6], 0
    %14 = vsyncpa [#allocation4], 0
    %s15 = scalar_lea.sflag [#allocation4], 1
    %16 = vsyncpa %s15, 0
    loop: start=0, step=1, limit=4
    $region2: #{tpu_custom_call.1} parent=1 // loop_pre_header
      _
    $region3: #{tpu_custom_call.1} parent=1 // loop_header
      %s18 = sphi 0, %s22
      %p19 = scmp.ge.s32.totalorder %s18, 4
      %s28 = sphi 0, %s30
      %s31 = sphi 0, %s28
      %s32 = sphi 0, %s31
      %s48 = sphi 0, %s32
      %s52 = sphi 0, %s52
      %s54 = sphi 0, %s52
      %s55 = sphi 0, %s54
      %s69 = sphi 0, %s55
      %s73 = sphi 0, %s73
      %s75 = sphi 0, %s73
      %s76 = sphi 0, %s75
      %s90 = sphi 0, %s76
      %s94 = sphi 0, %s94
      %s96 = sphi 0, %s94
      %s97 = sphi 0, %s96
      %s111 = sphi 0, %s97
      %s115 = sphi 0, %s115
      %s117 = sphi 0, %s115
      %s118 = sphi 0, %s117
      %s132 = sphi 0, %s118
      %s138 = sphi 0, %s140
      %s141 = sphi 0, %s138
      %s142 = sphi 0, %s141
      %s158 = sphi 0, %s142
    $region4: #{tpu_custom_call.1} parent=1 // loop_header_branch
      %21 = sbr.rel (%p19) target = $region8
    $region5: #{tpu_custom_call.1} parent=1 // loop_body
      %s23 = ssub.s32 %s18, 1
      %s24 = ssub.s32 %s18, 2
      %s25 = sadd.s32 %s18, 1
      %s26 = ssub.s32 %s18, %s25
      %p27 = scmp.eq.s32.totalorder %s26, 0
      %s29 = sadd.s32 %s28, 1
      %s30 = scalar_select %p27, %s28, %s29
      %p33 = pneg %p27
      %p34 = scmp.eq.s32.totalorder %s18, 1
      %p35 = por %p33, %p34
      %p36 = scmp.ne.s32.totalorder %s28, %s31
      %p37 = scmp.eq.s32.totalorder %s18, 0
      %p38 = por %p36, %p37
      %p39 = scmp.ne.s32.totalorder %s28, %s31
      %p40 = scmp.eq.s32.totalorder %s23, 1
      %p41 = por %p39, %p40
      %p42 = scmp.ne.s32.totalorder %s31, %s32
      %p43 = scmp.eq.s32.totalorder %s23, 0
      %p44 = por %p42, %p43
      %p45 = scmp.ne.s32.totalorder %s31, %s32
      %p46 = scmp.eq.s32.totalorder %s24, 1
      %p47 = por %p45, %p46
      %p49 = scmp.ne.s32.totalorder %s32, %s48
      %p50 = scmp.eq.s32.totalorder %s24, 0
      %p51 = por %p49, %p50
      %s53 = sadd.s32 %s52, 1
      %p56 = scmp.eq.s32.totalorder %s18, 1
      %p57 = scmp.ne.s32.totalorder %s52, %s54
      %p58 = scmp.eq.s32.totalorder %s18, 0
      %p59 = por %p57, %p58
      %p60 = scmp.ne.s32.totalorder %s52, %s54
      %p61 = scmp.eq.s32.totalorder %s23, 1
      %p62 = por %p60, %p61
      %p63 = scmp.ne.s32.totalorder %s54, %s55
      %p64 = scmp.eq.s32.totalorder %s23, 0
      %p65 = por %p63, %p64
      %p66 = scmp.ne.s32.totalorder %s54, %s55
      %p67 = scmp.eq.s32.totalorder %s24, 1
      %p68 = por %p66, %p67
      %p70 = scmp.ne.s32.totalorder %s55, %s69
      %p71 = scmp.eq.s32.totalorder %s24, 0
      %p72 = por %p70, %p71
      %s74 = sadd.s32 %s73, 1
      %p77 = scmp.eq.s32.totalorder %s18, 1
      %p78 = scmp.ne.s32.totalorder %s73, %s75
      %p79 = scmp.eq.s32.totalorder %s18, 0
      %p80 = por %p78, %p79
      %p81 = scmp.ne.s32.totalorder %s73, %s75
      %p82 = scmp.eq.s32.totalorder %s23, 1
      %p83 = por %p81, %p82
      %p84 = scmp.ne.s32.totalorder %s75, %s76
      %p85 = scmp.eq.s32.totalorder %s23, 0
      %p86 = por %p84, %p85
      %p87 = scmp.ne.s32.totalorder %s75, %s76
      %p88 = scmp.eq.s32.totalorder %s24, 1
      %p89 = por %p87, %p88
      %p91 = scmp.ne.s32.totalorder %s76, %s90
      %p92 = scmp.eq.s32.totalorder %s24, 0
      %p93 = por %p91, %p92
      %s95 = sadd.s32 %s94, 1
      %p98 = scmp.eq.s32.totalorder %s18, 1
      %p99 = scmp.ne.s32.totalorder %s94, %s96
      %p100 = scmp.eq.s32.totalorder %s18, 0
      %p101 = por %p99, %p100
      %p102 = scmp.ne.s32.totalorder %s94, %s96
      %p103 = scmp.eq.s32.totalorder %s23, 1
      %p104 = por %p102, %p103
      %p105 = scmp.ne.s32.totalorder %s96, %s97
      %p106 = scmp.eq.s32.totalorder %s23, 0
      %p107 = por %p105, %p106
      %p108 = scmp.ne.s32.totalorder %s96, %s97
      %p109 = scmp.eq.s32.totalorder %s24, 1
      %p110 = por %p108, %p109
      %p112 = scmp.ne.s32.totalorder %s97, %s111
      %p113 = scmp.eq.s32.totalorder %s24, 0
      %p114 = por %p112, %p113
      %s116 = sadd.s32 %s115, 1
      %p119 = scmp.eq.s32.totalorder %s18, 1
      %p120 = scmp.ne.s32.totalorder %s115, %s117
      %p121 = scmp.eq.s32.totalorder %s18, 0
      %p122 = por %p120, %p121
      %p123 = scmp.ne.s32.totalorder %s115, %s117
      %p124 = scmp.eq.s32.totalorder %s23, 1
      %p125 = por %p123, %p124
      %p126 = scmp.ne.s32.totalorder %s117, %s118
      %p127 = scmp.eq.s32.totalorder %s23, 0
      %p128 = por %p126, %p127
      %p129 = scmp.ne.s32.totalorder %s117, %s118
      %p130 = scmp.eq.s32.totalorder %s24, 1
      %p131 = por %p129, %p130
      %p133 = scmp.ne.s32.totalorder %s118, %s132
      %p134 = scmp.eq.s32.totalorder %s24, 0
      %p135 = por %p133, %p134
      %s136 = ssub.s32 %s18, %s25
      %p137 = scmp.eq.s32.totalorder %s136, 0
      %s139 = sadd.s32 %s138, 1
      %s140 = scalar_select %p137, %s138, %s139
      %p143 = pneg %p137
      %p144 = scmp.eq.s32.totalorder %s18, 1
      %p145 = por %p143, %p144
      %p146 = scmp.ne.s32.totalorder %s138, %s141
      %p147 = scmp.eq.s32.totalorder %s18, 0
      %p148 = por %p146, %p147
      %p149 = scmp.ne.s32.totalorder %s138, %s141
      %p150 = scmp.eq.s32.totalorder %s23, 1
      %p151 = por %p149, %p150
      %p152 = scmp.ne.s32.totalorder %s141, %s142
      %p153 = scmp.eq.s32.totalorder %s23, 0
      %p154 = por %p152, %p153
      %p155 = scmp.ne.s32.totalorder %s141, %s142
      %p156 = scmp.eq.s32.totalorder %s24, 1
      %p157 = por %p155, %p156
      %p159 = scmp.ne.s32.totalorder %s142, %s158
      %p160 = scmp.eq.s32.totalorder %s24, 0
      %p161 = por %p159, %p160
      %p162 = scmp.le.s32.totalorder 1, %s18
      %p163 = scmp.lt.s32.totalorder %s18, 3
      %p164 = pnand %p162, %p163
      %p165 = pneg %p164
      // Predicated region
      $region9: #{tpu_custom_call.1} parent=5 // pred_check
        _
      $region10: #{tpu_custom_call.1} parent=5 // pred_check_branch
        %167 = sbr.rel (%p164) target = $region12
      $region11: #{tpu_custom_call.1} parent=5 // pred_region
        %s168 = ssub.s32 %s18, 1
        // Predicated region
        $region13: #{tpu_custom_call.1} parent=11 // pred_check
          %p169 = pneg %p65
        $region14: #{tpu_custom_call.1} parent=11 // pred_check_branch
          %171 = sbr.rel (%p169) target = $region16
        $region15: #{tpu_custom_call.1} parent=11 // pred_region
          %s173 = ssub.s32 256, 256
          %174 = vsyncadd [#allocation6], %s173
          %s175 = sshll.u32 [#allocation5], 4
          %s176 = int_to_ptr.vmem [resolvable:$true] %s175
          %181 = dma.hbm_to_vmem [thread:$0]  %s1, 256, %s176, [#allocation6], 64, 64, 4
        $region16: #{tpu_custom_call.1} parent=11 // pred_fallthru
          _
        // Predicated region
        $region17: #{tpu_custom_call.1} parent=11 // pred_check
          %p182 = pneg %p86
        $region18: #{tpu_custom_call.1} parent=11 // pred_check_branch
          %184 = sbr.rel (%p182) target = $region20
        $region19: #{tpu_custom_call.1} parent=11 // pred_region
          _
        $region20: #{tpu_custom_call.1} parent=11 // pred_fallthru
          _
        // Predicated region
        $region21: #{tpu_custom_call.1} parent=11 // pred_check
          %p185 = pneg %p107
        $region22: #{tpu_custom_call.1} parent=11 // pred_check_branch
          %187 = sbr.rel (%p185) target = $region24
        $region23: #{tpu_custom_call.1} parent=11 // pred_region
          %s189 = ssub.s32 256, 256
          %190 = vsyncadd [#allocation6], %s189
          %s191 = sshll.u32 [#allocation7], 4
          %s192 = int_to_ptr.vmem [resolvable:$true] %s191
          %197 = dma.hbm_to_vmem [thread:$0]  %s3, 256, %s192, [#allocation6], 64, 64, 4
        $region24: #{tpu_custom_call.1} parent=11 // pred_fallthru
          _
        // Predicated region
        $region25: #{tpu_custom_call.1} parent=11 // pred_check
          %p198 = pneg %p128
        $region26: #{tpu_custom_call.1} parent=11 // pred_check_branch
          %200 = sbr.rel (%p198) target = $region28
        $region27: #{tpu_custom_call.1} parent=11 // pred_region
          _
        $region28: #{tpu_custom_call.1} parent=11 // pred_fallthru
          _
      $region12: #{tpu_custom_call.1} parent=5 // pred_fallthru
        _
      %p201 = scmp.lt.s32.totalorder %s18, 2
      // Predicated region
      $region29: #{tpu_custom_call.1} parent=5 // pred_check
        %p202 = pneg %p201
      $region30: #{tpu_custom_call.1} parent=5 // pred_check_branch
        %204 = sbr.rel (%p202) target = $region32
      $region31: #{tpu_custom_call.1} parent=5 // pred_region
        // Predicated region
        $region33: #{tpu_custom_call.1} parent=31 // pred_check
          %p205 = pneg %p38
        $region34: #{tpu_custom_call.1} parent=31 // pred_check_branch
          %207 = sbr.rel (%p205) target = $region36
        $region35: #{tpu_custom_call.1} parent=31 // pred_region
          %s208 = sand.u32 %s28, 1
          %s209 = scalar_lea.sflag [#allocation3], %s208
          %s210 = sand.u32 %s28, 1
          %s211 = smul.addr %s210, 4
          %s212 = scalar_lea.vmem [#allocation2], %s211
          %s214 = ssub.s32 64, 64
          %215 = vsyncadd %s209, %s214
          %s216 = smul.addr %s18, 64
          %s217 = scalar_lea.hbm %s0, %s216
          %s219 = sshll.u32 %s212, 4
          %s220 = int_to_ptr.vmem [resolvable:$true] %s219
          %222 = dma.hbm_to_vmem [thread:$0]  %s217, 64, %s220, %s209
        $region36: #{tpu_custom_call.1} parent=31 // pred_fallthru
          _
      $region32: #{tpu_custom_call.1} parent=5 // pred_fallthru
        _
      %p223 = scmp.le.s32.totalorder 1, %s18
      %p224 = scmp.lt.s32.totalorder %s18, 3
      %p225 = pnand %p223, %p224
      %p226 = pneg %p225
      // Predicated region
      $region37: #{tpu_custom_call.1} parent=5 // pred_check
        _
      $region38: #{tpu_custom_call.1} parent=5 // pred_check_branch
        %228 = sbr.rel (%p225) target = $region40
      $region39: #{tpu_custom_call.1} parent=5 // pred_region
        %s229 = ssub.s32 %s18, 1
        %s230 = sand.u32 %s31, 1
        %s231 = scalar_lea.sflag [#allocation3], %s230
        %s232 = sand.u32 %s31, 1
        %s233 = smul.addr %s232, 4
        %s234 = scalar_lea.vmem [#allocation2], %s233
        // Predicated region
        $region41: #{tpu_custom_call.1} parent=39 // pred_check
          %p235 = pneg %p44
        $region42: #{tpu_custom_call.1} parent=39 // pred_check_branch
          %237 = sbr.rel (%p235) target = $region44
        $region43: #{tpu_custom_call.1} parent=39 // pred_region
          %238 = dma.done %s231, 64
        $region44: #{tpu_custom_call.1} parent=39 // pred_fallthru
          _
        // Predicated region
        $region45: #{tpu_custom_call.1} parent=39 // pred_check
          %p239 = pneg %p65
        $region46: #{tpu_custom_call.1} parent=39 // pred_check_branch
          %241 = sbr.rel (%p239) target = $region48
        $region47: #{tpu_custom_call.1} parent=39 // pred_region
          %242 = dma.done [#allocation6], 256
        $region48: #{tpu_custom_call.1} parent=39 // pred_fallthru
          _
        // Predicated region
        $region49: #{tpu_custom_call.1} parent=39 // pred_check
          %p243 = pneg %p107
        $region50: #{tpu_custom_call.1} parent=39 // pred_check_branch
          %245 = sbr.rel (%p243) target = $region52
        $region51: #{tpu_custom_call.1} parent=39 // pred_region
          %246 = dma.done [#allocation6], 256
        $region52: #{tpu_custom_call.1} parent=39 // pred_fallthru
          _
        %s247 = sand.u32 %s31, 1
        %s248 = scalar_lea.sflag [#allocation3], %s247
        %s249 = sand.u32 %s31, 1
        %s250 = smul.addr %s249, 4
        %s251 = scalar_lea.vmem [#allocation2], %s250
        %p252 = pneg %p44
        %p253 = pneg %p41
        %p254 = pneg %p65
        %p255 = pneg %p62
        %p256 = pneg %p86
        %p257 = pneg %p83
        %p258 = pneg %p107
        %p259 = pneg %p104
        %p260 = pneg %p128
        %p261 = pneg %p125
        %p262 = pneg %p154
        %p263 = pneg %p151
        %s264 = sand.u32 %s141, 1
        %s265 = scalar_lea.sflag [#allocation4], %s264
        %s266 = sand.u32 %s141, 1
        %s267 = smul.addr %s266, 8
        %s268 = scalar_lea.vmem [#allocation8], %s267
        %v270 = vld [vmem:[%s234] sm:$0xf]
        %v271 = vld [vmem:[#allocation5] sm:$0xf]
        %v272 = vld [vmem:[#allocation5 + $0x4] sm:$0xf]
        %v273 = vld [vmem:[#allocation5 + $0x8] sm:$0xf]
        %v274 = vld [vmem:[#allocation5 + $0xc] sm:$0xf]
        %v275 = vld [vmem:[%s2] sm:$0x1]
        %v277 = vlaneseq
        %v278 = vshrl.u32 %v277, 7
        %v279 = vsub.s32 0, %v278
        %v280 = vrot.slane %v275, %v279
        %v286 = vunpack.c.l.b16 %v271
        %v287 = vunpack.c.l.b16 %v272
        %v288 = vunpack.c.l.b16 %v273
        %v289 = vunpack.c.l.b16 %v274
        %v290 = vpack.c.b16 %v287, %v286
        %v291 = vpack.c.b16 %v289, %v288
        %vm294 = vcmask 261120
        %v296 = vsel %vm294, %v270, 0
        %298 = vmatprep.subr.bf16.mxu0 0
        %299 = vmatpush1.bf16.msra.mxu0 0
        %300 = vmatprep.subr.bf16.mxu0 0
        %301 = vmatpush1.bf16.msra.mxu0 0
        %302 = vmatprep.subr.bf16.mxu0 0
        %303 = vmatpush1.bf16.msra.mxu0 0
        %304 = vmatprep.subr.bf16.mxu0 0
        %305 = vmatpush1.bf16.msra.mxu0 0
        %306 = vmatprep.subr.bf16.mxu0 0
        %307 = vmatpush1.bf16.msra.mxu0 0
        %308 = vmatprep.subr.bf16.mxu0 0
        %309 = vmatpush1.bf16.msra.mxu0 0
        %310 = vmatprep.subr.bf16.mxu0 0
        %311 = vmatpush1.bf16.msra.mxu0 %v291
        %312 = vmatprep.subr.bf16.mxu0 0
        %313 = vmatpush1.bf16.msra.mxu0 %v290
        %314 = vmatprep.subr.bf16.mxu0 0
        %315 = vmatpush2.bf16.msra.mxu0 0
        %316 = vmatprep.subr.bf16.mxu0 0
        %317 = vmatpush2.bf16.msra.mxu0 0
        %318 = vmatprep.subr.bf16.mxu0 0
        %319 = vmatpush2.bf16.msra.mxu0 0
        %320 = vmatprep.subr.bf16.mxu0 0
        %321 = vmatpush2.bf16.msra.mxu0 0
        %322 = vmatprep.subr.bf16.mxu0 0
        %323 = vmatpush2.bf16.msra.mxu0 0
        %324 = vmatprep.subr.bf16.mxu0 0
        %325 = vmatpush2.bf16.msra.mxu0 0
        %326 = vmatprep.subr.bf16.mxu0 0
        %327 = vmatpush2.bf16.msra.mxu0 0
        %328 = vmatprep.subr.bf16.mxu0 0
        %329 = vmatpush2.bf16.msra.mxu0 0
        %330 = vmatprep.mubr.bf16.mxu0 0
        %331 = vmatmul.mubr.bf16.gmra.mxu0 %v296
        %v332 = vpop.f32.mrf.mxu0
        %v333 = vadd.f32 %v280, %v332
        %v334 = vpop.f32.mrf.mxu0
        %v335 = vpop.f32.mrf.mxu0
        %v336 = vpop.f32.mrf.mxu0
        %337 = vdwg.mxu0
        %v338 = vpack.c.bf16 %v333, %v333
        %v339 = vlaneseq
        %v340 = vshrl.u32 %v339, 7
        %v341 = vlaneseq
        %v342 = vand.u32 %v341, 127
        %vm343 = vcmp.gt.s32.totalorder %v342, %v340
        %345 = vrot.lane.b32.xlu0 %v338, 96
        %v346 = vpop.permute.xlu0 %345
        %vm347 = vcmask 64512
        %v349 = vsel %vm347, %v338, 0
        %v352 = vsel %vm347, %v346, 0
        %354 = vmatprep.subr.bf16.mxu0 0
        %355 = vmatpush1.bf16.xpose.msra.mxu0 0
        %356 = vmatprep.subr.bf16.mxu0 0
        %357 = vmatpush1.bf16.xpose.msra.mxu0 0
        %358 = vmatprep.subr.bf16.mxu0 0
        %359 = vmatpush1.bf16.xpose.msra.mxu0 0
        %360 = vmatprep.subr.bf16.mxu0 0
        %361 = vmatpush1.bf16.xpose.msra.mxu0 0
        %362 = vmatprep.subr.bf16.mxu0 0
        %363 = vmatpush1.bf16.xpose.msra.mxu0 0
        %364 = vmatprep.subr.bf16.mxu0 0
        %365 = vmatpush1.bf16.xpose.msra.mxu0 0
        %366 = vmatprep.subr.bf16.mxu0 0
        %367 = vmatpush1.bf16.xpose.msra.mxu0 0
        %368 = vmatprep.subr.bf16.mxu0 0
        %369 = vmatpush1.bf16.xpose.msra.mxu0 %v352
        %370 = vmatprep.subr.bf16.mxu0 0
        %371 = vmatpush2.bf16.xpose.msra.mxu0 0
        %372 = vmatprep.subr.bf16.mxu0 0
        %373 = vmatpush2.bf16.xpose.msra.mxu0 0
        %374 = vmatprep.subr.bf16.mxu0 0
        %375 = vmatpush2.bf16.xpose.msra.mxu0 0
        %376 = vmatprep.subr.bf16.mxu0 0
        %377 = vmatpush2.bf16.xpose.msra.mxu0 0
        %378 = vmatprep.subr.bf16.mxu0 0
        %379 = vmatpush2.bf16.xpose.msra.mxu0 0
        %380 = vmatprep.subr.bf16.mxu0 0
        %381 = vmatpush2.bf16.xpose.msra.mxu0 0
        %382 = vmatprep.subr.bf16.mxu0 0
        %383 = vmatpush2.bf16.xpose.msra.mxu0 0
        %384 = vmatprep.subr.bf16.mxu0 0
        %385 = vmatpush2.bf16.xpose.msra.mxu0 0
        %386 = vmatprep.mubr.bf16.mxu0 0
        %387 = vmatmul.mubr.bf16.gmra.mxu0 %v349
        %v388 = vpop.f32.mrf.mxu0
        %v389 = vadd.f32 0.0, %v388
        %v390 = vpop.f32.mrf.mxu0
        %v391 = vpop.f32.mrf.mxu0
        %v392 = vpop.f32.mrf.mxu0
        %393 = vdwg.mxu0
        %v394 = vsel %vm343, -100000.0, %v389
        %v395 = vsel %vm347, %v394, -inf
        %396 = vmax.xlane.f32.xlu0 %v395
        %v397 = vpop.xlane.xlu0 %396
        %v398 = vsub.f32 %v394, %v397
        %v399 = vmul.f32 %v398, 1.442695
        %v400 = vpow.pop %v399
        %v401 = vsel %vm347, %v400, 0.0
        %402 = vadd.xlane.f32.xlu0 %v401
        %v403 = vpop.xlane.xlu0 %402
        %v404 = vrcp.pop %v403
        %v405 = vmul.f32 %v400, %v404
        %v406 = vpack.c.bf16 %v405, %v405
        %407 = vrot.lane.b32.xlu0 %v338, 64
        %v408 = vpop.permute.xlu0 %407
        %v410 = vsel %vm347, %v406, 0
        %vm412 = vcmask 1043456
        %v414 = vsel %vm412, %v408, 0
        %416 = vmatprep.subr.bf16.mxu0 0
        %417 = vmatpush1.bf16.msra.mxu0 0
        %418 = vmatprep.subr.bf16.mxu0 0
        %419 = vmatpush1.bf16.msra.mxu0 0
        %420 = vmatprep.subr.bf16.mxu0 0
        %421 = vmatpush1.bf16.msra.mxu0 0
        %422 = vmatprep.subr.bf16.mxu0 0
        %423 = vmatpush1.bf16.msra.mxu0 0
        %424 = vmatprep.subr.bf16.mxu0 0
        %425 = vmatpush1.bf16.msra.mxu0 0
        %426 = vmatprep.subr.bf16.mxu0 0
        %427 = vmatpush1.bf16.msra.mxu0 0
        %428 = vmatprep.subr.bf16.mxu0 0
        %429 = vmatpush1.bf16.msra.mxu0 0
        %430 = vmatprep.subr.bf16.mxu0 0
        %431 = vmatpush1.bf16.msra.mxu0 %v414
        %432 = vmatprep.subr.bf16.mxu0 0
        %433 = vmatpush2.bf16.msra.mxu0 0
        %434 = vmatprep.subr.bf16.mxu0 0
        %435 = vmatpush2.bf16.msra.mxu0 0
        %436 = vmatprep.subr.bf16.mxu0 0
        %437 = vmatpush2.bf16.msra.mxu0 0
        %438 = vmatprep.subr.bf16.mxu0 0
        %439 = vmatpush2.bf16.msra.mxu0 0
        %440 = vmatprep.subr.bf16.mxu0 0
        %441 = vmatpush2.bf16.msra.mxu0 0
        %442 = vmatprep.subr.bf16.mxu0 0
        %443 = vmatpush2.bf16.msra.mxu0 0
        %444 = vmatprep.subr.bf16.mxu0 0
        %445 = vmatpush2.bf16.msra.mxu0 0
        %446 = vmatprep.subr.bf16.mxu0 0
        %447 = vmatpush2.bf16.msra.mxu0 0
        %448 = vmatprep.mubr.bf16.mxu0 0
        %449 = vmatmul.mubr.bf16.gmra.mxu0 %v410
        %v450 = vpop.f32.mrf.mxu0
        %v451 = vadd.f32 0.0, %v450
        %v452 = vpop.f32.mrf.mxu0
        %v453 = vpop.f32.mrf.mxu0
        %v454 = vpop.f32.mrf.mxu0
        %455 = vdwg.mxu0
        %456 = vrot.lane.b32.xlu0 %v338, 120
        %v457 = vpop.permute.xlu0 %456
        %458 = vrot.lane.b32.xlu0 %v338, 88
        %v459 = vpop.permute.xlu0 %458
        %v461 = vsel %vm347, %v457, 0
        %v464 = vsel %vm347, %v459, 0
        %466 = vmatprep.subr.bf16.mxu0 0
        %467 = vmatpush1.bf16.xpose.msra.mxu0 0
        %468 = vmatprep.subr.bf16.mxu0 0
        %469 = vmatpush1.bf16.xpose.msra.mxu0 0
        %470 = vmatprep.subr.bf16.mxu0 0
        %471 = vmatpush1.bf16.xpose.msra.mxu0 0
        %472 = vmatprep.subr.bf16.mxu0 0
        %473 = vmatpush1.bf16.xpose.msra.mxu0 0
        %474 = vmatprep.subr.bf16.mxu0 0
        %475 = vmatpush1.bf16.xpose.msra.mxu0 0
        %476 = vmatprep.subr.bf16.mxu0 0
        %477 = vmatpush1.bf16.xpose.msra.mxu0 0
        %478 = vmatprep.subr.bf16.mxu0 0
        %479 = vmatpush1.bf16.xpose.msra.mxu0 0
        %480 = vmatprep.subr.bf16.mxu0 0
        %481 = vmatpush1.bf16.xpose.msra.mxu0 %v464
        %482 = vmatprep.subr.bf16.mxu0 0
        %483 = vmatpush2.bf16.xpose.msra.mxu0 0
        %484 = vmatprep.subr.bf16.mxu0 0
        %485 = vmatpush2.bf16.xpose.msra.mxu0 0
        %486 = vmatprep.subr.bf16.mxu0 0
        %487 = vmatpush2.bf16.xpose.msra.mxu0 0
        %488 = vmatprep.subr.bf16.mxu0 0
        %489 = vmatpush2.bf16.xpose.msra.mxu0 0
        %490 = vmatprep.subr.bf16.mxu0 0
        %491 = vmatpush2.bf16.xpose.msra.mxu0 0
        %492 = vmatprep.subr.bf16.mxu0 0
        %493 = vmatpush2.bf16.xpose.msra.mxu0 0
        %494 = vmatprep.subr.bf16.mxu0 0
        %495 = vmatpush2.bf16.xpose.msra.mxu0 0
        %496 = vmatprep.subr.bf16.mxu0 0
        %497 = vmatpush2.bf16.xpose.msra.mxu0 0
        %498 = vmatprep.mubr.bf16.mxu0 0
        %499 = vmatmul.mubr.bf16.gmra.mxu0 %v461
        %v500 = vpop.f32.mrf.mxu0
        %v501 = vadd.f32 0.0, %v500
        %v502 = vpop.f32.mrf.mxu0
        %v503 = vpop.f32.mrf.mxu0
        %v504 = vpop.f32.mrf.mxu0
        %505 = vdwg.mxu0
        %v506 = vsel %vm343, -100000.0, %v501
        %v507 = vsel %vm347, %v506, -inf
        %508 = vmax.xlane.f32.xlu0 %v507
        %v509 = vpop.xlane.xlu0 %508
        %v510 = vsub.f32 %v506, %v509
        %v511 = vmul.f32 %v510, 1.442695
        %v512 = vpow.pop %v511
        %v513 = vsel %vm347, %v512, 0.0
        %514 = vadd.xlane.f32.xlu0 %v513
        %v515 = vpop.xlane.xlu0 %514
        %v516 = vrcp.pop %v515
        %v517 = vmul.f32 %v512, %v516
        %v518 = vpack.c.bf16 %v517, %v517
        %519 = vrot.lane.b32.xlu0 %v338, 56
        %v520 = vpop.permute.xlu0 %519
        %v522 = vsel %vm347, %v518, 0
        %v525 = vsel %vm412, %v520, 0
        %527 = vmatprep.subr.bf16.mxu0 0
        %528 = vmatpush1.bf16.msra.mxu0 0
        %529 = vmatprep.subr.bf16.mxu0 0
        %530 = vmatpush1.bf16.msra.mxu0 0
        %531 = vmatprep.subr.bf16.mxu0 0
        %532 = vmatpush1.bf16.msra.mxu0 0
        %533 = vmatprep.subr.bf16.mxu0 0
        %534 = vmatpush1.bf16.msra.mxu0 0
        %535 = vmatprep.subr.bf16.mxu0 0
        %536 = vmatpush1.bf16.msra.mxu0 0
        %537 = vmatprep.subr.bf16.mxu0 0
        %538 = vmatpush1.bf16.msra.mxu0 0
        %539 = vmatprep.subr.bf16.mxu0 0
        %540 = vmatpush1.bf16.msra.mxu0 0
        %541 = vmatprep.subr.bf16.mxu0 0
        %542 = vmatpush1.bf16.msra.mxu0 %v525
        %543 = vmatprep.subr.bf16.mxu0 0
        %544 = vmatpush2.bf16.msra.mxu0 0
        %545 = vmatprep.subr.bf16.mxu0 0
        %546 = vmatpush2.bf16.msra.mxu0 0
        %547 = vmatprep.subr.bf16.mxu0 0
        %548 = vmatpush2.bf16.msra.mxu0 0
        %549 = vmatprep.subr.bf16.mxu0 0
        %550 = vmatpush2.bf16.msra.mxu0 0
        %551 = vmatprep.subr.bf16.mxu0 0
        %552 = vmatpush2.bf16.msra.mxu0 0
        %553 = vmatprep.subr.bf16.mxu0 0
        %554 = vmatpush2.bf16.msra.mxu0 0
        %555 = vmatprep.subr.bf16.mxu0 0
        %556 = vmatpush2.bf16.msra.mxu0 0
        %557 = vmatprep.subr.bf16.mxu0 0
        %558 = vmatpush2.bf16.msra.mxu0 0
        %559 = vmatprep.mubr.bf16.mxu0 0
        %560 = vmatmul.mubr.bf16.gmra.mxu0 %v522
        %v561 = vpop.f32.mrf.mxu0
        %v562 = vadd.f32 0.0, %v561
        %v563 = vpop.f32.mrf.mxu0
        %v564 = vpop.f32.mrf.mxu0
        %v565 = vpop.f32.mrf.mxu0
        %566 = vdwg.mxu0
        %567 = vrot.lane.b32.xlu0 %v338, 112
        %v568 = vpop.permute.xlu0 %567
        %569 = vrot.lane.b32.xlu0 %v338, 80
        %v570 = vpop.permute.xlu0 %569
        %v572 = vsel %vm347, %v568, 0
        %v575 = vsel %vm347, %v570, 0
        %577 = vmatprep.subr.bf16.mxu0 0
        %578 = vmatpush1.bf16.xpose.msra.mxu0 0
        %579 = vmatprep.subr.bf16.mxu0 0
        %580 = vmatpush1.bf16.xpose.msra.mxu0 0
        %581 = vmatprep.subr.bf16.mxu0 0
        %582 = vmatpush1.bf16.xpose.msra.mxu0 0
        %583 = vmatprep.subr.bf16.mxu0 0
        %584 = vmatpush1.bf16.xpose.msra.mxu0 0
        %585 = vmatprep.subr.bf16.mxu0 0
        %586 = vmatpush1.bf16.xpose.msra.mxu0 0
        %587 = vmatprep.subr.bf16.mxu0 0
        %588 = vmatpush1.bf16.xpose.msra.mxu0 0
        %589 = vmatprep.subr.bf16.mxu0 0
        %590 = vmatpush1.bf16.xpose.msra.mxu0 0
        %591 = vmatprep.subr.bf16.mxu0 0
        %592 = vmatpush1.bf16.xpose.msra.mxu0 %v575
        %593 = vmatprep.subr.bf16.mxu0 0
        %594 = vmatpush2.bf16.xpose.msra.mxu0 0
        %595 = vmatprep.subr.bf16.mxu0 0
        %596 = vmatpush2.bf16.xpose.msra.mxu0 0
        %597 = vmatprep.subr.bf16.mxu0 0
        %598 = vmatpush2.bf16.xpose.msra.mxu0 0
        %599 = vmatprep.subr.bf16.mxu0 0
        %600 = vmatpush2.bf16.xpose.msra.mxu0 0
        %601 = vmatprep.subr.bf16.mxu0 0
        %602 = vmatpush2.bf16.xpose.msra.mxu0 0
        %603 = vmatprep.subr.bf16.mxu0 0
        %604 = vmatpush2.bf16.xpose.msra.mxu0 0
        %605 = vmatprep.subr.bf16.mxu0 0
        %606 = vmatpush2.bf16.xpose.msra.mxu0 0
        %607 = vmatprep.subr.bf16.mxu0 0
        %608 = vmatpush2.bf16.xpose.msra.mxu0 0
        %609 = vmatprep.mubr.bf16.mxu0 0
        %610 = vmatmul.mubr.bf16.gmra.mxu0 %v572
        %v611 = vpop.f32.mrf.mxu0
        %v612 = vadd.f32 0.0, %v611
        %v613 = vpop.f32.mrf.mxu0
        %v614 = vpop.f32.mrf.mxu0
        %v615 = vpop.f32.mrf.mxu0
        %616 = vdwg.mxu0
        %v617 = vsel %vm343, -100000.0, %v612
        %v618 = vsel %vm347, %v617, -inf
        %619 = vmax.xlane.f32.xlu0 %v618
        %v620 = vpop.xlane.xlu0 %619
        %v621 = vsub.f32 %v617, %v620
        %v622 = vmul.f32 %v621, 1.442695
        %v623 = vpow.pop %v622
        %v624 = vsel %vm347, %v623, 0.0
        %625 = vadd.xlane.f32.xlu0 %v624
        %v626 = vpop.xlane.xlu0 %625
        %v627 = vrcp.pop %v626
        %v628 = vmul.f32 %v623, %v627
        %v629 = vpack.c.bf16 %v628, %v628
        %630 = vrot.lane.b32.xlu0 %v338, 48
        %v631 = vpop.permute.xlu0 %630
        %v633 = vsel %vm347, %v629, 0
        %v636 = vsel %vm412, %v631, 0
        %638 = vmatprep.subr.bf16.mxu0 0
        %639 = vmatpush1.bf16.msra.mxu0 0
        %640 = vmatprep.subr.bf16.mxu0 0
        %641 = vmatpush1.bf16.msra.mxu0 0
        %642 = vmatprep.subr.bf16.mxu0 0
        %643 = vmatpush1.bf16.msra.mxu0 0
        %644 = vmatprep.subr.bf16.mxu0 0
        %645 = vmatpush1.bf16.msra.mxu0 0
        %646 = vmatprep.subr.bf16.mxu0 0
        %647 = vmatpush1.bf16.msra.mxu0 0
        %648 = vmatprep.subr.bf16.mxu0 0
        %649 = vmatpush1.bf16.msra.mxu0 0
        %650 = vmatprep.subr.bf16.mxu0 0
        %651 = vmatpush1.bf16.msra.mxu0 0
        %652 = vmatprep.subr.bf16.mxu0 0
        %653 = vmatpush1.bf16.msra.mxu0 %v636
        %654 = vmatprep.subr.bf16.mxu0 0
        %655 = vmatpush2.bf16.msra.mxu0 0
        %656 = vmatprep.subr.bf16.mxu0 0
        %657 = vmatpush2.bf16.msra.mxu0 0
        %658 = vmatprep.subr.bf16.mxu0 0
        %659 = vmatpush2.bf16.msra.mxu0 0
        %660 = vmatprep.subr.bf16.mxu0 0
        %661 = vmatpush2.bf16.msra.mxu0 0
        %662 = vmatprep.subr.bf16.mxu0 0
        %663 = vmatpush2.bf16.msra.mxu0 0
        %664 = vmatprep.subr.bf16.mxu0 0
        %665 = vmatpush2.bf16.msra.mxu0 0
        %666 = vmatprep.subr.bf16.mxu0 0
        %667 = vmatpush2.bf16.msra.mxu0 0
        %668 = vmatprep.subr.bf16.mxu0 0
        %669 = vmatpush2.bf16.msra.mxu0 0
        %670 = vmatprep.mubr.bf16.mxu0 0
        %671 = vmatmul.mubr.bf16.gmra.mxu0 %v633
        %v672 = vpop.f32.mrf.mxu0
        %v673 = vadd.f32 0.0, %v672
        %v674 = vpop.f32.mrf.mxu0
        %v675 = vpop.f32.mrf.mxu0
        %v676 = vpop.f32.mrf.mxu0
        %677 = vdwg.mxu0
        %678 = vrot.lane.b32.xlu0 %v338, 104
        %v679 = vpop.permute.xlu0 %678
        %680 = vrot.lane.b32.xlu0 %v338, 72
        %v681 = vpop.permute.xlu0 %680
        %v683 = vsel %vm347, %v679, 0
        %v686 = vsel %vm347, %v681, 0
        %688 = vmatprep.subr.bf16.mxu0 0
        %689 = vmatpush1.bf16.xpose.msra.mxu0 0
        %690 = vmatprep.subr.bf16.mxu0 0
        %691 = vmatpush1.bf16.xpose.msra.mxu0 0
        %692 = vmatprep.subr.bf16.mxu0 0
        %693 = vmatpush1.bf16.xpose.msra.mxu0 0
        %694 = vmatprep.subr.bf16.mxu0 0
        %695 = vmatpush1.bf16.xpose.msra.mxu0 0
        %696 = vmatprep.subr.bf16.mxu0 0
        %697 = vmatpush1.bf16.xpose.msra.mxu0 0
        %698 = vmatprep.subr.bf16.mxu0 0
        %699 = vmatpush1.bf16.xpose.msra.mxu0 0
        %700 = vmatprep.subr.bf16.mxu0 0
        %701 = vmatpush1.bf16.xpose.msra.mxu0 0
        %702 = vmatprep.subr.bf16.mxu0 0
        %703 = vmatpush1.bf16.xpose.msra.mxu0 %v686
        %704 = vmatprep.subr.bf16.mxu0 0
        %705 = vmatpush2.bf16.xpose.msra.mxu0 0
        %706 = vmatprep.subr.bf16.mxu0 0
        %707 = vmatpush2.bf16.xpose.msra.mxu0 0
        %708 = vmatprep.subr.bf16.mxu0 0
        %709 = vmatpush2.bf16.xpose.msra.mxu0 0
        %710 = vmatprep.subr.bf16.mxu0 0
        %711 = vmatpush2.bf16.xpose.msra.mxu0 0
        %712 = vmatprep.subr.bf16.mxu0 0
        %713 = vmatpush2.bf16.xpose.msra.mxu0 0
        %714 = vmatprep.subr.bf16.mxu0 0
        %715 = vmatpush2.bf16.xpose.msra.mxu0 0
        %716 = vmatprep.subr.bf16.mxu0 0
        %717 = vmatpush2.bf16.xpose.msra.mxu0 0
        %718 = vmatprep.subr.bf16.mxu0 0
        %719 = vmatpush2.bf16.xpose.msra.mxu0 0
        %720 = vmatprep.mubr.bf16.mxu0 0
        %721 = vmatmul.mubr.bf16.gmra.mxu0 %v683
        %v722 = vpop.f32.mrf.mxu0
        %v723 = vadd.f32 0.0, %v722
        %v724 = vpop.f32.mrf.mxu0
        %v725 = vpop.f32.mrf.mxu0
        %v726 = vpop.f32.mrf.mxu0
        %727 = vdwg.mxu0
        %v728 = vsel %vm343, -100000.0, %v723
        %v729 = vsel %vm347, %v728, -inf
        %730 = vmax.xlane.f32.xlu0 %v729
        %v731 = vpop.xlane.xlu0 %730
        %v732 = vsub.f32 %v728, %v731
        %v733 = vmul.f32 %v732, 1.442695
        %v734 = vpow.pop %v733
        %v735 = vsel %vm347, %v734, 0.0
        %736 = vadd.xlane.f32.xlu0 %v735
        %v737 = vpop.xlane.xlu0 %736
        %v738 = vrcp.pop %v737
        %v739 = vmul.f32 %v734, %v738
        %v740 = vpack.c.bf16 %v739, %v739
        %741 = vrot.lane.b32.xlu0 %v338, 40
        %v742 = vpop.permute.xlu0 %741
        %v744 = vsel %vm347, %v740, 0
        %v747 = vsel %vm412, %v742, 0
        %749 = vmatprep.subr.bf16.mxu0 0
        %750 = vmatpush1.bf16.msra.mxu0 0
        %751 = vmatprep.subr.bf16.mxu0 0
        %752 = vmatpush1.bf16.msra.mxu0 0
        %753 = vmatprep.subr.bf16.mxu0 0
        %754 = vmatpush1.bf16.msra.mxu0 0
        %755 = vmatprep.subr.bf16.mxu0 0
        %756 = vmatpush1.bf16.msra.mxu0 0
        %757 = vmatprep.subr.bf16.mxu0 0
        %758 = vmatpush1.bf16.msra.mxu0 0
        %759 = vmatprep.subr.bf16.mxu0 0
        %760 = vmatpush1.bf16.msra.mxu0 0
        %761 = vmatprep.subr.bf16.mxu0 0
        %762 = vmatpush1.bf16.msra.mxu0 0
        %763 = vmatprep.subr.bf16.mxu0 0
        %764 = vmatpush1.bf16.msra.mxu0 %v747
        %765 = vmatprep.subr.bf16.mxu0 0
        %766 = vmatpush2.bf16.msra.mxu0 0
        %767 = vmatprep.subr.bf16.mxu0 0
        %768 = vmatpush2.bf16.msra.mxu0 0
        %769 = vmatprep.subr.bf16.mxu0 0
        %770 = vmatpush2.bf16.msra.mxu0 0
        %771 = vmatprep.subr.bf16.mxu0 0
        %772 = vmatpush2.bf16.msra.mxu0 0
        %773 = vmatprep.subr.bf16.mxu0 0
        %774 = vmatpush2.bf16.msra.mxu0 0
        %775 = vmatprep.subr.bf16.mxu0 0
        %776 = vmatpush2.bf16.msra.mxu0 0
        %777 = vmatprep.subr.bf16.mxu0 0
        %778 = vmatpush2.bf16.msra.mxu0 0
        %779 = vmatprep.subr.bf16.mxu0 0
        %780 = vmatpush2.bf16.msra.mxu0 0
        %781 = vmatprep.mubr.bf16.mxu0 0
        %782 = vmatmul.mubr.bf16.gmra.mxu0 %v744
        %v783 = vpop.f32.mrf.mxu0
        %v784 = vadd.f32 0.0, %v783
        %v785 = vpop.f32.mrf.mxu0
        %v786 = vpop.f32.mrf.mxu0
        %v787 = vpop.f32.mrf.mxu0
        %788 = vdwg.mxu0
        %790 = vrot.lane.b32.xlu0 %v562, 8
        %v791 = vpop.permute.xlu0 %790
        %794 = vrot.lane.b32.xlu0 %v673, 16
        %v795 = vpop.permute.xlu0 %794
        %798 = vrot.lane.b32.xlu0 %v784, 24
        %v799 = vpop.permute.xlu0 %798
        %v801 = vsel %vm347, %v451, %v791
        %vm802 = vcmask 130048
        %v803 = vsel %vm802, %v801, %v795
        %vm804 = vcmask 195584
        %v805 = vsel %vm804, %v803, %v799
        %v806 = vpack.c.bf16 %v805, %v805
        %v807 = vld [vmem:[#allocation7] sm:$0xf]
        %v808 = vld [vmem:[#allocation7 + $0x4] sm:$0xf]
        %v809 = vld [vmem:[#allocation7 + $0x8] sm:$0xf]
        %v810 = vld [vmem:[#allocation7 + $0xc] sm:$0xf]
        %v811 = vld [vmem:[%s4] sm:$0x1]
        %v813 = vlaneseq
        %v814 = vshrl.u32 %v813, 7
        %v815 = vsub.s32 0, %v814
        %v816 = vrot.slane %v811, %v815
        %v822 = vunpack.c.l.b16 %v807
        %v823 = vunpack.c.l.b16 %v808
        %v824 = vunpack.c.l.b16 %v809
        %v825 = vunpack.c.l.b16 %v810
        %v826 = vpack.c.b16 %v823, %v822
        %v827 = vpack.c.b16 %v825, %v824
        %v831 = vsel %vm294, %v806, 0
        %833 = vmatprep.subr.bf16.mxu0 0
        %834 = vmatpush1.bf16.msra.mxu0 0
        %835 = vmatprep.subr.bf16.mxu0 0
        %836 = vmatpush1.bf16.msra.mxu0 0
        %837 = vmatprep.subr.bf16.mxu0 0
        %838 = vmatpush1.bf16.msra.mxu0 0
        %839 = vmatprep.subr.bf16.mxu0 0
        %840 = vmatpush1.bf16.msra.mxu0 0
        %841 = vmatprep.subr.bf16.mxu0 0
        %842 = vmatpush1.bf16.msra.mxu0 0
        %843 = vmatprep.subr.bf16.mxu0 0
        %844 = vmatpush1.bf16.msra.mxu0 0
        %845 = vmatprep.subr.bf16.mxu0 0
        %846 = vmatpush1.bf16.msra.mxu0 %v827
        %847 = vmatprep.subr.bf16.mxu0 0
        %848 = vmatpush1.bf16.msra.mxu0 %v826
        %849 = vmatprep.subr.bf16.mxu0 0
        %850 = vmatpush2.bf16.msra.mxu0 0
        %851 = vmatprep.subr.bf16.mxu0 0
        %852 = vmatpush2.bf16.msra.mxu0 0
        %853 = vmatprep.subr.bf16.mxu0 0
        %854 = vmatpush2.bf16.msra.mxu0 0
        %855 = vmatprep.subr.bf16.mxu0 0
        %856 = vmatpush2.bf16.msra.mxu0 0
        %857 = vmatprep.subr.bf16.mxu0 0
        %858 = vmatpush2.bf16.msra.mxu0 0
        %859 = vmatprep.subr.bf16.mxu0 0
        %860 = vmatpush2.bf16.msra.mxu0 0
        %861 = vmatprep.subr.bf16.mxu0 0
        %862 = vmatpush2.bf16.msra.mxu0 0
        %863 = vmatprep.subr.bf16.mxu0 0
        %864 = vmatpush2.bf16.msra.mxu0 0
        %865 = vmatprep.mubr.bf16.mxu0 0
        %866 = vmatmul.mubr.bf16.gmra.mxu0 %v831
        %v867 = vpop.f32.mrf.mxu0
        %v868 = vadd.f32 %v816, %v867
        %v869 = vpop.f32.mrf.mxu0
        %v870 = vpop.f32.mrf.mxu0
        %v871 = vpop.f32.mrf.mxu0
        %872 = vdwg.mxu0
        %873 = vst.msk [vmem:[%s268] sm:$0xff] %vm294, %v868
        %s874 = sand.u32 %s141, 1
        %s875 = scalar_lea.sflag [#allocation4], %s874
        %s876 = sand.u32 %s141, 1
        %s877 = smul.addr %s876, 8
        %s878 = scalar_lea.vmem [#allocation8], %s877
        // Predicated region
        $region53: #{tpu_custom_call.1} parent=39 // pred_check
          %p879 = pneg %p151
        $region54: #{tpu_custom_call.1} parent=39 // pred_check_branch
          %881 = sbr.rel (%p879) target = $region56
        $region55: #{tpu_custom_call.1} parent=39 // pred_region
          %s883 = ssub.s32 128, 128
          %884 = vsyncadd %s875, %s883
          %s885 = smul.addr %s23, 128
          %s886 = scalar_lea.hbm %s5, %s885
          %s888 = sshll.u32 %s878, 4
          %s889 = int_to_ptr.vmem [resolvable:$true] %s888
          %891 = dma.vmem_to_hbm [thread:$0]  %s889, 128, %s886, %s875
        $region56: #{tpu_custom_call.1} parent=39 // pred_fallthru
          _
      $region40: #{tpu_custom_call.1} parent=5 // pred_fallthru
        _
      %p892 = scmp.le.s32.totalorder 2, %s18
      // Predicated region
      $region57: #{tpu_custom_call.1} parent=5 // pred_check
        %p893 = pneg %p892
      $region58: #{tpu_custom_call.1} parent=5 // pred_check_branch
        %895 = sbr.rel (%p893) target = $region60
      $region59: #{tpu_custom_call.1} parent=5 // pred_region
        %s896 = ssub.s32 %s18, 2
        // Predicated region
        $region61: #{tpu_custom_call.1} parent=59 // pred_check
          %p897 = pneg %p157
        $region62: #{tpu_custom_call.1} parent=59 // pred_check_branch
          %899 = sbr.rel (%p897) target = $region64
        $region63: #{tpu_custom_call.1} parent=59 // pred_region
          %s900 = sand.u32 %s142, 1
          %s901 = scalar_lea.sflag [#allocation4], %s900
          %s902 = sand.u32 %s142, 1
          %s903 = smul.addr %s902, 8
          %s904 = scalar_lea.vmem [#allocation8], %s903
          %905 = dma.done %s901, 128
        $region64: #{tpu_custom_call.1} parent=59 // pred_fallthru
          _
      $region60: #{tpu_custom_call.1} parent=5 // pred_fallthru
        _
    $region6: #{tpu_custom_call.1} parent=1 // loop_footer
      %s22 = sadd.s32 1, %s18
    $region7: #{tpu_custom_call.1} parent=1 // loop_footer_branch
      %17 = sbr.rel target = $region3
    $region8: #{tpu_custom_call.1} parent=1 // loop_exit
      _
    %906 = vsyncpa [#allocation3], 1
    %s907 = scalar_lea.sflag [#allocation3], 1
    %908 = vsyncpa %s907, 1
    %909 = vsyncpa [#allocation6], 1
    %910 = vsyncpa [#allocation4], 1
    %s911 = scalar_lea.sflag [#allocation4], 1
    %912 = vsyncpa %s911, 1

</llo_original>
